<compile_context>
chip_gen: v6e
topology: v6e:2x2x1
jax: 0.10.0
libtpu: 0.0.40
codegen_flags: <defaults>
</compile_context>

<pallas_src>
import jax
import jax.numpy as jnp
import numpy as np
from jax.experimental import pallas as pl
from jax.experimental.pallas import tpu as pltpu


def _composition_kernel(types_ref, sys_ref, at_ref, wt_ref,
                        per_atom_ref, per_struct_ref, counts_acc):
    i = pl.program_id(0)

    @pl.when(i == 0)
    def _():
        counts_acc[...] = jnp.zeros_like(counts_acc)

    types_row = types_ref[...]                      # (1, tile)       int32
    sys_row = sys_ref[...]                          # (1, tile)       int32
    at_col = at_ref[...]                            # (n_types, 1)    int32
    w_t = wt_ref[...]                               # (n_props, n_types) f32

    # Transposed one-hot: X^T[t, a] = 1 iff atom a has atomic type t.
    # Padded tail atoms carry sentinel type -1 -> all-zero column.
    x_onehot_t = (at_col == types_row).astype(jnp.float32)     # (n_types, tile)

    # Per-atom prediction, props-major: (W^T) @ (X^T) -> (n_props, tile).
    # Lane-dense (tile is a multiple of 128) -> unmasked stores.
    per_atom_ref[...] = jnp.dot(w_t, x_onehot_t,
                                preferred_element_type=jnp.float32)

    # Per-structure composition counts: contract over the atom (lane) axis.
    n_systems = counts_acc.shape[0]
    sys_iota = jax.lax.broadcasted_iota(jnp.int32, (n_systems, 1), 0)
    s_onehot_t = (sys_iota == sys_row).astype(jnp.float32)     # (n_systems, tile)
    counts_acc[...] += jax.lax.dot_general(
        s_onehot_t, x_onehot_t,
        dimension_numbers=(((1,), (1,)), ((), ())),
        preferred_element_type=jnp.float32)                    # (n_systems, n_types)

    @pl.when(i == pl.num_programs(0) - 1)
    def _():
        # per-structure prediction: counts @ W  (== counts contracted with W^T)
        per_struct_ref[...] = jax.lax.dot_general(
            counts_acc[...], w_t,
            dimension_numbers=(((1,), (1,)), ((), ())),
            preferred_element_type=jnp.float32)                # (n_systems, n_props)


def _round_up(x, m):
    return ((x + m - 1) // m) * m


def composition_forward(types, sys_ids, atomic_types, weights, n_systems,
                        *, tile_atoms=2048):
    """Fused composition-model forward pass.

    Returns (per_atom_predictions (n_atoms, n_props),
             per_structure_predictions (n_systems, n_props)).
    """
    n_atoms = int(types.shape[0])
    n_types, n_props = weights.shape

    # Atom tile: multiple of 128 (lane width), capped at tile_atoms.
    tile = min(_round_up(tile_atoms, 128), _round_up(max(n_atoms, 1), 128))
    n_pad = _round_up(max(n_atoms, 1), tile)
    grid = n_pad // tile
    pad = n_pad - n_atoms

    # Atoms on lanes; padded tail gets sentinel type -1 (matches nothing).
    types_row = jnp.pad(types.astype(jnp.int32), (0, pad),
                        constant_values=-1).reshape(1, n_pad)
    sys_row = jnp.pad(sys_ids.astype(jnp.int32), (0, pad),
                      constant_values=0).reshape(1, n_pad)
    at_col = atomic_types.astype(jnp.int32).reshape(n_types, 1)
    w_t = weights.astype(jnp.float32).T                         # (n_props, n_types)

    flops = (2 * n_pad * n_types * (n_props + n_systems)
             + 2 * n_systems * n_types * n_props)
    bytes_accessed = (2 * 4 * n_pad                 # types + sys_ids in
                      + 4 * n_types * (1 + n_props)  # atomic_types + W^T
                      + 4 * n_props * n_pad          # per_atom out (dominant)
                      + 4 * n_systems * n_props)     # per_struct out

    per_atom_t, per_struct = pl.pallas_call(
        _composition_kernel,
        out_shape=(
            jax.ShapeDtypeStruct((n_props, n_pad), jnp.float32),
            jax.ShapeDtypeStruct((n_systems, n_props), jnp.float32),
        ),
        grid=(grid,),
        in_specs=[
            pl.BlockSpec((1, tile), lambda i: (0, i)),           # types
            pl.BlockSpec((1, tile), lambda i: (0, i)),           # sys_ids
            pl.BlockSpec((n_types, 1), lambda i: (0, 0)),        # atomic types (resident)
            pl.BlockSpec((n_props, n_types), lambda i: (0, 0)),  # W^T (resident)
        ],
        out_specs=(
            pl.BlockSpec((n_props, tile), lambda i: (0, i)),         # per-atom (props-major)
            pl.BlockSpec((n_systems, n_props), lambda i: (0, 0)),    # per-structure (resident)
        ),
        scratch_shapes=[pltpu.VMEM((n_systems, n_types), jnp.float32)],
        compiler_params=pltpu.CompilerParams(
            dimension_semantics=("arbitrary",),          # running counts reduction
            vmem_limit_bytes=32 * 1024 * 1024),
        cost_estimate=pl.CostEstimate(flops=flops, transcendentals=0,
                                      bytes_accessed=bytes_accessed),
    )(types_row, sys_row, at_col, w_t)

    # Back to the reference (samples, properties) layout; drop the padded tail.
    per_atom = per_atom_t[:, :n_atoms].T
    return per_atom, per_struct


def _reference(types, sys_ids, atomic_types, weights, n_systems):
    """Pure-numpy float64 reference (same math as the torch forward)."""
    types_np = np.asarray(types)
    at_np = np.asarray(atomic_types)
    w_np = np.asarray(weights, dtype=np.float64)
    x_onehot = (types_np[:, None] == at_np[None, :]).astype(np.float64)
    per_atom = x_onehot @ w_np
    sys_np = np.asarray(sys_ids)
    s_onehot = (sys_np[:, None] == np.arange(n_systems)[None, :]).astype(np.float64)
    counts = s_onehot.T @ x_onehot
    per_struct = counts @ w_np
    return per_atom, per_struct


if __name__ == "__main__":
    key = jax.random.PRNGKey(0)

    # ---- deterministic synthetic "model" + "systems" (small shapes) --------
    atomic_types_list = [1, 6, 7, 8]              # n_atomic_types = 4
    n_types = len(atomic_types_list)
    n_props = 8                                   # n_properties of the target block
    n_systems = 2
    atoms_per_system = [5, 11]                    # total n_atoms = 16
    n_atoms = sum(atoms_per_system)

    key, wk, tk = jax.random.split(key, 3)
    weights = jax.random.normal(wk, (n_types, n_props), dtype=jnp.float32)
    atomic_types = jnp.asarray(atomic_types_list, dtype=jnp.int32)
    type_idx = jax.random.randint(tk, (n_atoms,), 0, n_types)
    types = atomic_types[type_idx]                                  # (n_atoms,)
    sys_ids = jnp.asarray(
        np.repeat(np.arange(n_systems, dtype=np.int32), atoms_per_system))

    # ---- run the Pallas kernel (single tile) --------------------------------
    per_atom, per_struct = composition_forward(
        types, sys_ids, atomic_types, weights, n_systems)
    jax.block_until_ready((per_atom, per_struct))

    pa_ref, ps_ref = _reference(types, sys_ids, atomic_types, weights, n_systems)
    np.testing.assert_allclose(np.asarray(per_atom), pa_ref, rtol=1e-5, atol=1e-5)
    np.testing.assert_allclose(np.asarray(per_struct), ps_ref, rtol=1e-5, atol=1e-5)

    # ---- second check: multiple grid tiles + ragged tail --------------------
    n_atoms2 = 300                                # not a multiple of 128
    n_systems2 = 3
    key, tk2, sk2 = jax.random.split(key, 3)
    type_idx2 = jax.random.randint(tk2, (n_atoms2,), 0, n_types)
    types2 = atomic_types[type_idx2]
    sys_ids2 = jnp.sort(jax.random.randint(sk2, (n_atoms2,), 0, n_systems2)).astype(jnp.int32)

    per_atom2, per_struct2 = composition_forward(
        types2, sys_ids2, atomic_types, weights, n_systems2, tile_atoms=128)
    jax.block_until_ready((per_atom2, per_struct2))

    pa_ref2, ps_ref2 = _reference(types2, sys_ids2, atomic_types, weights, n_systems2)
    np.testing.assert_allclose(np.asarray(per_atom2), pa_ref2, rtol=1e-5, atol=1e-5)
    np.testing.assert_allclose(np.asarray(per_struct2), ps_ref2, rtol=1e-5, atol=1e-5)

    print("KERNEL_OK")
</pallas_src>

<mosaic_0001>
module attributes {stable_mosaic.version = 11 : i64} {
  func.func @_composition_kernel(%arg0: i32, %arg1: memref<1x128xi32, #tpu.memory_space<vmem>>, %arg2: memref<1x128xi32, #tpu.memory_space<vmem>>, %arg3: memref<4x1xi32, #tpu.memory_space<vmem>>, %arg4: memref<8x4xf32, #tpu.memory_space<vmem>>, %arg5: memref<8x128xf32, #tpu.memory_space<vmem>>, %arg6: memref<2x8xf32, #tpu.memory_space<vmem>>, %arg7: memref<2x4xf32, #tpu.memory_space<vmem>>) attributes {dimension_semantics = [#tpu.dimension_semantics<arbitrary>], iteration_bounds = array<i64: 1>, scalar_prefetch = 0 : i64, scratch_operands = 1 : i64, tpu.core_type = #tpu.core_type<tc>, window_params = [{transform_indices = @transform_0, window_bounds = array<i64: 1, 128>}, {transform_indices = @transform_1, window_bounds = array<i64: 1, 128>}, {pipeline_mode = #tpu.pipeline_mode<synchronous>, transform_indices = @transform_2, window_bounds = array<i64: 4, 1>}, {pipeline_mode = #tpu.pipeline_mode<synchronous>, transform_indices = @transform_3, window_bounds = array<i64: 8, 4>}, {transform_indices = @transform_4, window_bounds = array<i64: 8, 128>}, {pipeline_mode = #tpu.pipeline_mode<synchronous>, transform_indices = @transform_5, window_bounds = array<i64: 2, 8>}]} {
    %c0_i32 = arith.constant 0 : i32
    %0 = arith.cmpi eq, %arg0, %c0_i32 : i32
    %1 = arith.extui %0 : i1 to i32
    %c0_i32_0 = arith.constant 0 : i32
    %2 = arith.cmpi ne, %1, %c0_i32_0 : i32
    scf.if %2 {
      %cst_17 = arith.constant 0.000000e+00 : f32
      %27 = vector.broadcast %cst_17 : f32 to vector<2x4xf32>
      %c0_18 = arith.constant 0 : index
      %c0_19 = arith.constant 0 : index
      %28 = vector.load %arg7[%c0_18, %c0_19] : memref<2x4xf32, #tpu.memory_space<vmem>>, vector<2x4xf32>
      tpu.vector_store %arg7[%c0_18, %c0_19], %27 {strides = array<i32>} : memref<2x4xf32, #tpu.memory_space<vmem>>, vector<2x4xf32>,
    } else {
    }
    %c0 = arith.constant 0 : index
    %c0_1 = arith.constant 0 : index
    %3 = vector.load %arg1[%c0, %c0_1] : memref<1x128xi32, #tpu.memory_space<vmem>>, vector<1x128xi32>
    %c0_2 = arith.constant 0 : index
    %c0_3 = arith.constant 0 : index
    %4 = vector.load %arg2[%c0_2, %c0_3] : memref<1x128xi32, #tpu.memory_space<vmem>>, vector<1x128xi32>
    %c0_4 = arith.constant 0 : index
    %c0_5 = arith.constant 0 : index
    %5 = vector.load %arg3[%c0_4, %c0_5] : memref<4x1xi32, #tpu.memory_space<vmem>>, vector<4x1xi32>
    %c0_6 = arith.constant 0 : index
    %c0_7 = arith.constant 0 : index
    %6 = vector.load %arg4[%c0_6, %c0_7] : memref<8x4xf32, #tpu.memory_space<vmem>>, vector<8x4xf32>
    %7 = vector.broadcast %5 : vector<4x1xi32> to vector<4x128xi32>
    %8 = vector.broadcast %3 : vector<1x128xi32> to vector<4x128xi32>
    %9 = arith.cmpi eq, %7, %8 : vector<4x128xi32>
    %10 = arith.extui %9 : vector<4x128xi1> to vector<4x128xi32>
    %11 = arith.sitofp %10 : vector<4x128xi32> to vector<4x128xf32>
    %cst = arith.constant dense<0.000000e+00> : vector<8x128xf32>
    %12 = tpu.matmul %6, %11, %cst {dimension_numbers = #tpu.dot_dimension_numbers<[1], [0], [0], [1], [0, 0, 1, 1], [], []>} : vector<8x4xf32>, vector<4x128xf32>, vector<8x128xf32> -> vector<8x128xf32>
    %c0_8 = arith.constant 0 : index
    %c0_9 = arith.constant 0 : index
    %13 = vector.load %arg5[%c0_8, %c0_9] : memref<8x128xf32, #tpu.memory_space<vmem>>, vector<8x128xf32>
    tpu.vector_store %arg5[%c0_8, %c0_9], %12 {strides = array<i32>} : memref<8x128xf32, #tpu.memory_space<vmem>>, vector<8x128xf32>,
    %14 = tpu.iota {dimensions = array<i32: 0>} : vector<2x1xi32>
    %15 = vector.broadcast %14 : vector<2x1xi32> to vector<2x128xi32>
    %16 = vector.broadcast %4 : vector<1x128xi32> to vector<2x128xi32>
    %17 = arith.cmpi eq, %15, %16 : vector<2x128xi32>
    %18 = arith.extui %17 : vector<2x128xi1> to vector<2x128xi32>
    %19 = arith.sitofp %18 : vector<2x128xi32> to vector<2x128xf32>
    %c0_10 = arith.constant 0 : index
    %c0_11 = arith.constant 0 : index
    %20 = vector.load %arg7[%c0_10, %c0_11] : memref<2x4xf32, #tpu.memory_space<vmem>>, vector<2x4xf32>
    %cst_12 = arith.constant dense<0.000000e+00> : vector<2x4xf32>
    %21 = tpu.matmul %19, %11, %cst_12 {dimension_numbers = #tpu.dot_dimension_numbers<[1], [1], [0], [0], [0, 0, 1, 0], [], []>} : vector<2x128xf32>, vector<4x128xf32>, vector<2x4xf32> -> vector<2x4xf32>
    %22 = arith.addf %20, %21 : vector<2x4xf32>
    %c0_13 = arith.constant 0 : index
    %c0_14 = arith.constant 0 : index
    %23 = vector.load %arg7[%c0_13, %c0_14] : memref<2x4xf32, #tpu.memory_space<vmem>>, vector<2x4xf32>
    tpu.vector_store %arg7[%c0_13, %c0_14], %22 {strides = array<i32>} : memref<2x4xf32, #tpu.memory_space<vmem>>, vector<2x4xf32>,
    %c0_i32_15 = arith.constant 0 : i32
    %24 = arith.cmpi eq, %arg0, %c0_i32_15 : i32
    %25 = arith.extui %24 : i1 to i32
    %c0_i32_16 = arith.constant 0 : i32
    %26 = arith.cmpi ne, %25, %c0_i32_16 : i32
    scf.if %26 {
      %c0_17 = arith.constant 0 : index
      %c0_18 = arith.constant 0 : index
      %27 = vector.load %arg7[%c0_17, %c0_18] : memref<2x4xf32, #tpu.memory_space<vmem>>, vector<2x4xf32>
      %cst_19 = arith.constant dense<0.000000e+00> : vector<2x8xf32>
      %28 = tpu.matmul %27, %6, %cst_19 {dimension_numbers = #tpu.dot_dimension_numbers<[1], [1], [0], [0], [0, 0, 1, 0], [], []>} : vector<2x4xf32>, vector<8x4xf32>, vector<2x8xf32> -> vector<2x8xf32>
      %c0_20 = arith.constant 0 : index
      %c0_21 = arith.constant 0 : index
      %29 = vector.load %arg6[%c0_20, %c0_21] : memref<2x8xf32, #tpu.memory_space<vmem>>, vector<2x8xf32>
      tpu.vector_store %arg6[%c0_20, %c0_21], %28 {strides = array<i32>} : memref<2x8xf32, #tpu.memory_space<vmem>>, vector<2x8xf32>,
    } else {
    }
    return
  }
  func.func @transform_0(%arg0: i32) -> (i32, i32) {
    %c0_i32 = arith.constant 0 : i32
    %c0_i32_0 = arith.constant 0 : i32
    return %c0_i32, %arg0 : i32, i32
  }
  func.func @transform_1(%arg0: i32) -> (i32, i32) {
    %c0_i32 = arith.constant 0 : i32
    %c0_i32_0 = arith.constant 0 : i32
    return %c0_i32, %arg0 : i32, i32
  }
  func.func @transform_2(%arg0: i32) -> (i32, i32) {
    %c0_i32 = arith.constant 0 : i32
    %c0_i32_0 = arith.constant 0 : i32
    %c0_i32_1 = arith.constant 0 : i32
    return %c0_i32, %c0_i32_0 : i32, i32
  }
  func.func @transform_3(%arg0: i32) -> (i32, i32) {
    %c0_i32 = arith.constant 0 : i32
    %c0_i32_0 = arith.constant 0 : i32
    %c0_i32_1 = arith.constant 0 : i32
    return %c0_i32, %c0_i32_0 : i32, i32
  }
  func.func @transform_4(%arg0: i32) -> (i32, i32) {
    %c0_i32 = arith.constant 0 : i32
    %c0_i32_0 = arith.constant 0 : i32
    return %c0_i32, %arg0 : i32, i32
  }
  func.func @transform_5(%arg0: i32) -> (i32, i32) {
    %c0_i32 = arith.constant 0 : i32
    %c0_i32_0 = arith.constant 0 : i32
    %c0_i32_1 = arith.constant 0 : i32
    return %c0_i32, %c0_i32_0 : i32, i32
  }
}

</mosaic_0001>

<llo_original>
// kernel: tpu_custom_call.1
$region0: #{tpu_custom_call.1}
  #allocation0 [shape = 'u32[]', space=smem, size = 0x4, offset = 0x4, fixed_abs, tag = 'smem constant byte address 0x4 - core index']
  #allocation1 [shape = 'u32[144,128]{1,0:T(1,128)}', space=vmem, size = 0x12000, scoped, tag = 'internal scratch']
  #allocation2 [shape = 'f32[2,4]{1,0:T(2,128)}', space=vmem, size = 0x400, scoped, tag = 'scratch operand']
  %s0 = inlined_call_operand.vmem [shape: s32[1,128], index: 0, kind: input, shape index: {}]
  %s1 = inlined_call_operand.vmem [shape: s32[1,128], index: 1, kind: input, shape index: {}]
  %s2 = inlined_call_operand.vmem [shape: s32[4,1], index: 2, kind: input, shape index: {}]
  %s3 = inlined_call_operand.vmem [shape: f32[8,4], index: 3, kind: input, shape index: {}]
  %s4 = inlined_call_operand.hbm [shape: f32[8,128], index: 4, kind: output, shape index: {0}]
  %s5 = inlined_call_operand.hbm [shape: f32[2,8], index: 5, kind: output, shape index: {1}]
  %6 = xla_tuple %s4, %s5
  %s7 = sld [smem:[#allocation0]]
  $region42: #{tpu_custom_call.1} parent=0
    _
  %s9 = ssub.s32 1, %s7
  %s10 = scalar_select 0, %s9, %s7
  $region1: #{tpu_custom_call.1} parent=0
    #allocation3 [shape = 'u8[4096]{0}', space=vmem, size = 0x1000, scoped, tag = 'output window, operand 0, single buffered']
    #allocation4 [shape = 's32[1]{0}', space=sflag, size = 0x4, scoped, tag = 'scoped memory for tpu_custom_call.1']
    #allocation5 [shape = 'u8[1024]{0}', space=vmem, size = 0x400, scoped, tag = 'output window, operand 1, single buffered']
    #allocation6 [shape = 's32[1]{0}', space=sflag, size = 0x4, scoped, tag = 'scoped memory for tpu_custom_call.1']
    %11 = vsyncpa [#allocation4], 0
    %12 = vsyncpa [#allocation6], 0
    // Predicated region
    $region2: #{tpu_custom_call.1} parent=1 // pred_check
      _
    $region3: #{tpu_custom_call.1} parent=1 // pred_check_branch
      %14 = sbr.rel (0) target = $region5
    $region4: #{tpu_custom_call.1} parent=1 // pred_region
      _
    $region5: #{tpu_custom_call.1} parent=1 // pred_fallthru
      _
    // Predicated region
    $region6: #{tpu_custom_call.1} parent=1 // pred_check
      _
    $region7: #{tpu_custom_call.1} parent=1 // pred_check_branch
      %16 = sbr.rel (0) target = $region9
    $region8: #{tpu_custom_call.1} parent=1 // pred_region
      _
    $region9: #{tpu_custom_call.1} parent=1 // pred_fallthru
      _
    // Predicated region
    $region10: #{tpu_custom_call.1} parent=1 // pred_check
      _
    $region11: #{tpu_custom_call.1} parent=1 // pred_check_branch
      %18 = sbr.rel (0) target = $region13
    $region12: #{tpu_custom_call.1} parent=1 // pred_region
      _
    $region13: #{tpu_custom_call.1} parent=1 // pred_fallthru
      _
    // Predicated region
    $region14: #{tpu_custom_call.1} parent=1 // pred_check
      _
    $region15: #{tpu_custom_call.1} parent=1 // pred_check_branch
      %20 = sbr.rel (0) target = $region17
    $region16: #{tpu_custom_call.1} parent=1 // pred_region
      _
    $region17: #{tpu_custom_call.1} parent=1 // pred_fallthru
      _
    %p21 = scmp.eq.s32.totalorder 0, 0
    // Predicated region
    $region18: #{tpu_custom_call.1} parent=1 // pred_check
      %p22 = pneg %p21
    $region19: #{tpu_custom_call.1} parent=1 // pred_check_branch
      %24 = sbr.rel (%p22) target = $region21
    $region20: #{tpu_custom_call.1} parent=1 // pred_region
      %vm25 = vcmask 25600
      %26 = vst.msk [vmem:[#allocation2] sm:$0x3] %vm25, 0.0
    $region21: #{tpu_custom_call.1} parent=1 // pred_fallthru
      _
    %v27 = vld [vmem:[%s0] sm:$0x1]
    %v28 = vld [vmem:[%s1] sm:$0x1]
    %v29 = vld [vmem:[%s2] sm:$0xf]
    %v30 = vld [vmem:[%s3] sm:$0xff]
    %31 = vset.pattern.permute.xlu0 0
    %32 = vperm.xlu0 %31, %v29
    %v33 = vpop.permute.xlu0 %32
    %v34 = vlaneseq
    %v35 = vshrl.u32 %v34, 7
    %v36 = vsub.s32 0, %v35
    %v37 = vrot.slane %v27, %v36
    %vm38 = vcmp.eq.s32.totalorder %v33, %v37
    %v39 = vsel %vm38, 1, 0
    %v40 = vcvt.s32.f32 %v39
    %vm41 = vcmask 31744
    %v43 = vsel %vm41, %v30, 0
    %vm45 = vcmask 1043456
    %v47 = vsel %vm45, %v40, 0
    %49 = vmatprep.subr.mxu0 0.0
    %50 = vmatpush1.msra.mxu0 0.0
    %51 = vmatprep.subr.mxu0 0.0
    %52 = vmatpush1.msra.mxu0 0.0
    %53 = vmatprep.subr.mxu0 0.0
    %54 = vmatpush1.msra.mxu0 0.0
    %55 = vmatprep.subr.mxu0 0.0
    %56 = vmatpush1.msra.mxu0 0.0
    %57 = vmatprep.subr.mxu0 0.0
    %58 = vmatpush1.msra.mxu0 0.0
    %59 = vmatprep.subr.mxu0 0.0
    %60 = vmatpush1.msra.mxu0 0.0
    %61 = vmatprep.subr.mxu0 0.0
    %62 = vmatpush1.msra.mxu0 0.0
    %63 = vmatprep.subr.mxu0 0.0
    %64 = vmatpush1.msra.mxu0 0.0
    %65 = vmatprep.subr.mxu0 0.0
    %66 = vmatpush1.msra.mxu0 0.0
    %67 = vmatprep.subr.mxu0 0.0
    %68 = vmatpush1.msra.mxu0 0.0
    %69 = vmatprep.subr.mxu0 0.0
    %70 = vmatpush1.msra.mxu0 0.0
    %71 = vmatprep.subr.mxu0 0.0
    %72 = vmatpush1.msra.mxu0 0.0
    %73 = vmatprep.subr.mxu0 0.0
    %74 = vmatpush1.msra.mxu0 0.0
    %75 = vmatprep.subr.mxu0 0.0
    %76 = vmatpush1.msra.mxu0 0.0
    %77 = vmatprep.subr.mxu0 0.0
    %78 = vmatpush1.msra.mxu0 0.0
    %79 = vmatprep.subr.mxu0 0.0
    %80 = vmatpush1.msra.mxu0 %v47
    %81 = vmatprep.subr.mxu0 0.0
    %82 = vmatpush2.msra.mxu0 0.0
    %83 = vmatprep.subr.mxu0 0.0
    %84 = vmatpush2.msra.mxu0 0.0
    %85 = vmatprep.subr.mxu0 0.0
    %86 = vmatpush2.msra.mxu0 0.0
    %87 = vmatprep.subr.mxu0 0.0
    %88 = vmatpush2.msra.mxu0 0.0
    %89 = vmatprep.subr.mxu0 0.0
    %90 = vmatpush2.msra.mxu0 0.0
    %91 = vmatprep.subr.mxu0 0.0
    %92 = vmatpush2.msra.mxu0 0.0
    %93 = vmatprep.subr.mxu0 0.0
    %94 = vmatpush2.msra.mxu0 0.0
    %95 = vmatprep.subr.mxu0 0.0
    %96 = vmatpush2.msra.mxu0 0.0
    %97 = vmatprep.subr.mxu0 0.0
    %98 = vmatpush2.msra.mxu0 0.0
    %99 = vmatprep.subr.mxu0 0.0
    %100 = vmatpush2.msra.mxu0 0.0
    %101 = vmatprep.subr.mxu0 0.0
    %102 = vmatpush2.msra.mxu0 0.0
    %103 = vmatprep.subr.mxu0 0.0
    %104 = vmatpush2.msra.mxu0 0.0
    %105 = vmatprep.subr.mxu0 0.0
    %106 = vmatpush2.msra.mxu0 0.0
    %107 = vmatprep.subr.mxu0 0.0
    %108 = vmatpush2.msra.mxu0 0.0
    %109 = vmatprep.subr.mxu0 0.0
    %110 = vmatpush2.msra.mxu0 0.0
    %111 = vmatprep.subr.mxu0 0.0
    %112 = vmatpush2.msra.mxu0 0.0
    %113 = vmatprep.mubr.f32.mxu0 0.0
    %114 = vmatmul.mubr.f32.gmra.mxu0 %v43
    %v115 = vpop.f32.mrf.mxu0
    %v116 = vadd.f32 0.0, %v115
    %v117 = vpop.f32.mrf.mxu0
    %118 = vdwg.mxu0
    %119 = vst [vmem:[#allocation3] sm:$0xff] %v116
    %v120 = vlaneseq
    %v121 = vshrl.u32 %v120, 7
    %v122 = vlaneseq
    %v123 = vshrl.u32 %v122, 7
    %v124 = vsub.s32 0, %v123
    %v125 = vrot.slane %v28, %v124
    %vm126 = vcmp.eq.s32.totalorder %v121, %v125
    %v127 = vsel %vm126, 1, 0
    %v128 = vcvt.s32.f32 %v127
    %v129 = vld [vmem:[#allocation2] sm:$0x3]
    %130 = vmatprep.subr.mxu0 0.0
    %131 = vmatpush1.xpose.msra.mxu0 0.0
    %132 = vmatprep.subr.mxu0 0.0
    %133 = vmatpush1.xpose.msra.mxu0 0.0
    %134 = vmatprep.subr.mxu0 0.0
    %135 = vmatpush1.xpose.msra.mxu0 0.0
    %136 = vmatprep.subr.mxu0 0.0
    %137 = vmatpush1.xpose.msra.mxu0 0.0
    %138 = vmatprep.subr.mxu0 0.0
    %139 = vmatpush1.xpose.msra.mxu0 0.0
    %140 = vmatprep.subr.mxu0 0.0
    %141 = vmatpush1.xpose.msra.mxu0 0.0
    %142 = vmatprep.subr.mxu0 0.0
    %143 = vmatpush1.xpose.msra.mxu0 0.0
    %144 = vmatprep.subr.mxu0 0.0
    %145 = vmatpush1.xpose.msra.mxu0 0.0
    %146 = vmatprep.subr.mxu0 0.0
    %147 = vmatpush1.xpose.msra.mxu0 0.0
    %148 = vmatprep.subr.mxu0 0.0
    %149 = vmatpush1.xpose.msra.mxu0 0.0
    %150 = vmatprep.subr.mxu0 0.0
    %151 = vmatpush1.xpose.msra.mxu0 0.0
    %152 = vmatprep.subr.mxu0 0.0
    %153 = vmatpush1.xpose.msra.mxu0 0.0
    %154 = vmatprep.subr.mxu0 0.0
    %155 = vmatpush1.xpose.msra.mxu0 0.0
    %156 = vmatprep.subr.mxu0 0.0
    %157 = vmatpush1.xpose.msra.mxu0 0.0
    %158 = vmatprep.subr.mxu0 0.0
    %159 = vmatpush1.xpose.msra.mxu0 0.0
    %160 = vmatprep.subr.mxu0 0.0
    %161 = vmatpush1.xpose.msra.mxu0 %v40
    %162 = vmatprep.subr.mxu0 0.0
    %163 = vmatpush2.xpose.msra.mxu0 0.0
    %164 = vmatprep.subr.mxu0 0.0
    %165 = vmatpush2.xpose.msra.mxu0 0.0
    %166 = vmatprep.subr.mxu0 0.0
    %167 = vmatpush2.xpose.msra.mxu0 0.0
    %168 = vmatprep.subr.mxu0 0.0
    %169 = vmatpush2.xpose.msra.mxu0 0.0
    %170 = vmatprep.subr.mxu0 0.0
    %171 = vmatpush2.xpose.msra.mxu0 0.0
    %172 = vmatprep.subr.mxu0 0.0
    %173 = vmatpush2.xpose.msra.mxu0 0.0
    %174 = vmatprep.subr.mxu0 0.0
    %175 = vmatpush2.xpose.msra.mxu0 0.0
    %176 = vmatprep.subr.mxu0 0.0
    %177 = vmatpush2.xpose.msra.mxu0 0.0
    %178 = vmatprep.subr.mxu0 0.0
    %179 = vmatpush2.xpose.msra.mxu0 0.0
    %180 = vmatprep.subr.mxu0 0.0
    %181 = vmatpush2.xpose.msra.mxu0 0.0
    %182 = vmatprep.subr.mxu0 0.0
    %183 = vmatpush2.xpose.msra.mxu0 0.0
    %184 = vmatprep.subr.mxu0 0.0
    %185 = vmatpush2.xpose.msra.mxu0 0.0
    %186 = vmatprep.subr.mxu0 0.0
    %187 = vmatpush2.xpose.msra.mxu0 0.0
    %188 = vmatprep.subr.mxu0 0.0
    %189 = vmatpush2.xpose.msra.mxu0 0.0
    %190 = vmatprep.subr.mxu0 0.0
    %191 = vmatpush2.xpose.msra.mxu0 0.0
    %192 = vmatprep.subr.mxu0 0.0
    %193 = vmatpush2.xpose.msra.mxu0 0.0
    %194 = vmatprep.mubr.f32.mxu0 0.0
    %195 = vmatmul.mubr.f32.gmra.mxu0 %v128
    %v196 = vpop.f32.mrf.mxu0
    %v197 = vadd.f32 0.0, %v196
    %v198 = vpop.f32.mrf.mxu0
    %199 = vdwg.mxu0
    %v200 = vadd.f32 %v129, %v197
    %vm201 = vcmask 25600
    %202 = vst.msk [vmem:[#allocation2] sm:$0x3] %vm201, %v200
    // Predicated region
    $region22: #{tpu_custom_call.1} parent=1 // pred_check
      %p203 = pneg %p21
    $region23: #{tpu_custom_call.1} parent=1 // pred_check_branch
      %205 = sbr.rel (%p203) target = $region25
    $region24: #{tpu_custom_call.1} parent=1 // pred_region
      %v206 = vld [vmem:[#allocation2] sm:$0x3]
      %v208 = vsel %vm41, %v206, 0
      %210 = vmatprep.subr.mxu0 0.0
      %211 = vmatpush1.xpose.msra.mxu0 0.0
      %212 = vmatprep.subr.mxu0 0.0
      %213 = vmatpush1.xpose.msra.mxu0 0.0
      %214 = vmatprep.subr.mxu0 0.0
      %215 = vmatpush1.xpose.msra.mxu0 0.0
      %216 = vmatprep.subr.mxu0 0.0
      %217 = vmatpush1.xpose.msra.mxu0 0.0
      %218 = vmatprep.subr.mxu0 0.0
      %219 = vmatpush1.xpose.msra.mxu0 0.0
      %220 = vmatprep.subr.mxu0 0.0
      %221 = vmatpush1.xpose.msra.mxu0 0.0
      %222 = vmatprep.subr.mxu0 0.0
      %223 = vmatpush1.xpose.msra.mxu0 0.0
      %224 = vmatprep.subr.mxu0 0.0
      %225 = vmatpush1.xpose.msra.mxu0 0.0
      %226 = vmatprep.subr.mxu0 0.0
      %227 = vmatpush1.xpose.msra.mxu0 0.0
      %228 = vmatprep.subr.mxu0 0.0
      %229 = vmatpush1.xpose.msra.mxu0 0.0
      %230 = vmatprep.subr.mxu0 0.0
      %231 = vmatpush1.xpose.msra.mxu0 0.0
      %232 = vmatprep.subr.mxu0 0.0
      %233 = vmatpush1.xpose.msra.mxu0 0.0
      %234 = vmatprep.subr.mxu0 0.0
      %235 = vmatpush1.xpose.msra.mxu0 0.0
      %236 = vmatprep.subr.mxu0 0.0
      %237 = vmatpush1.xpose.msra.mxu0 0.0
      %238 = vmatprep.subr.mxu0 0.0
      %239 = vmatpush1.xpose.msra.mxu0 0.0
      %240 = vmatprep.subr.mxu0 0.0
      %241 = vmatpush1.xpose.msra.mxu0 %v43
      %242 = vmatprep.subr.mxu0 0.0
      %243 = vmatpush2.xpose.msra.mxu0 0.0
      %244 = vmatprep.subr.mxu0 0.0
      %245 = vmatpush2.xpose.msra.mxu0 0.0
      %246 = vmatprep.subr.mxu0 0.0
      %247 = vmatpush2.xpose.msra.mxu0 0.0
      %248 = vmatprep.subr.mxu0 0.0
      %249 = vmatpush2.xpose.msra.mxu0 0.0
      %250 = vmatprep.subr.mxu0 0.0
      %251 = vmatpush2.xpose.msra.mxu0 0.0
      %252 = vmatprep.subr.mxu0 0.0
      %253 = vmatpush2.xpose.msra.mxu0 0.0
      %254 = vmatprep.subr.mxu0 0.0
      %255 = vmatpush2.xpose.msra.mxu0 0.0
      %256 = vmatprep.subr.mxu0 0.0
      %257 = vmatpush2.xpose.msra.mxu0 0.0
      %258 = vmatprep.subr.mxu0 0.0
      %259 = vmatpush2.xpose.msra.mxu0 0.0
      %260 = vmatprep.subr.mxu0 0.0
      %261 = vmatpush2.xpose.msra.mxu0 0.0
      %262 = vmatprep.subr.mxu0 0.0
      %263 = vmatpush2.xpose.msra.mxu0 0.0
      %264 = vmatprep.subr.mxu0 0.0
      %265 = vmatpush2.xpose.msra.mxu0 0.0
      %266 = vmatprep.subr.mxu0 0.0
      %267 = vmatpush2.xpose.msra.mxu0 0.0
      %268 = vmatprep.subr.mxu0 0.0
      %269 = vmatpush2.xpose.msra.mxu0 0.0
      %270 = vmatprep.subr.mxu0 0.0
      %271 = vmatpush2.xpose.msra.mxu0 0.0
      %272 = vmatprep.subr.mxu0 0.0
      %273 = vmatpush2.xpose.msra.mxu0 0.0
      %274 = vmatprep.mubr.f32.mxu0 0.0
      %275 = vmatmul.mubr.f32.gmra.mxu0 %v208
      %v276 = vpop.f32.mrf.mxu0
      %v277 = vadd.f32 0.0, %v276
      %v278 = vpop.f32.mrf.mxu0
      %279 = vdwg.mxu0
      %vm280 = vcmask 58368
      %281 = vst.msk [vmem:[#allocation5] sm:$0x3] %vm280, %v277
    $region25: #{tpu_custom_call.1} parent=1 // pred_fallthru
      _
    // Predicated region
    $region26: #{tpu_custom_call.1} parent=1 // pred_check
      _
    $region27: #{tpu_custom_call.1} parent=1 // pred_check_branch
      %283 = sbr.rel (0) target = $region29
    $region28: #{tpu_custom_call.1} parent=1 // pred_region
      %s285 = ssub.s32 128, 128
      %286 = vsyncadd [#allocation4], %s285
      %s288 = sshll.u32 [#allocation3], 4
      %s289 = int_to_ptr.vmem [resolvable:$true] %s288
      %291 = dma.vmem_to_hbm [thread:$0]  %s289, 128, %s4, [#allocation4]
    $region29: #{tpu_custom_call.1} parent=1 // pred_fallthru
      _
    // Predicated region
    $region30: #{tpu_custom_call.1} parent=1 // pred_check
      _
    $region31: #{tpu_custom_call.1} parent=1 // pred_check_branch
      %293 = sbr.rel (0) target = $region33
    $region32: #{tpu_custom_call.1} parent=1 // pred_region
      %s295 = ssub.s32 32, 32
      %296 = vsyncadd [#allocation6], %s295
      %s298 = sshll.u32 [#allocation5], 4
      %s299 = int_to_ptr.vmem [resolvable:$true] %s298
      %301 = dma.vmem_to_hbm [thread:$0]  %s299, 32, %s5, [#allocation6]
    $region33: #{tpu_custom_call.1} parent=1 // pred_fallthru
      _
    // Predicated region
    $region34: #{tpu_custom_call.1} parent=1 // pred_check
      _
    $region35: #{tpu_custom_call.1} parent=1 // pred_check_branch
      %303 = sbr.rel (0) target = $region37
    $region36: #{tpu_custom_call.1} parent=1 // pred_region
      %304 = dma.done [#allocation4], 128
    $region37: #{tpu_custom_call.1} parent=1 // pred_fallthru
      _
    // Predicated region
    $region38: #{tpu_custom_call.1} parent=1 // pred_check
      _
    $region39: #{tpu_custom_call.1} parent=1 // pred_check_branch
      %306 = sbr.rel (0) target = $region41
    $region40: #{tpu_custom_call.1} parent=1 // pred_region
      %307 = dma.done [#allocation6], 32
    $region41: #{tpu_custom_call.1} parent=1 // pred_fallthru
      _
    %308 = vsyncpa [#allocation4], 1
    %309 = vsyncpa [#allocation6], 1

</llo_original>
